<compile_context>
chip_gen: v6e
topology: v6e:2x2x1
jax: 0.10.0
libtpu: 0.0.40
codegen_flags: <defaults>
</compile_context>

<pallas_src>
import functools

import jax
import jax.numpy as jnp
from jax.experimental import pallas as pl
from jax.experimental.pallas import tpu as pltpu


# ---------------------------------------------------------------------------
# Helpers
# ---------------------------------------------------------------------------
def _pick_cout_tile(c_out, max_tile=128):
    """Output-channel tile: full C_out if small, else a multiple-of-8 divisor."""
    if c_out <= max_tile:
        return c_out
    for t in range(max_tile, 0, -8):
        if t % 8 == 0 and c_out % t == 0:
            return t
    return c_out


def weight_norm_weights(v, g):
    """Materialize nn.utils.weight_norm (dim=0) weights in plain JAX (tiny, one-off)."""
    norm = jnp.sqrt(jnp.sum(v * v, axis=(1, 2), keepdims=True))
    return g.reshape(-1, 1, 1) * v / norm


def _conv_from_padded(padded_ref, w_ref, b_ref, out_ref, *, kernel, stride, dilation):
    """VALID Conv1d over the padded signal held in a VMEM scratch.

    padded_ref: (1, C_in, L_in) scratch, w_ref: (K, C_out_tile, C_in) (tap-major),
    b_ref: (C_out_tile, 1), out_ref: (1, C_out_tile, L_out).
    Accumulates per-tap MXU matmuls in f32.
    """
    l_out = out_ref.shape[-1]
    c_in = padded_ref.shape[1]
    xp = padded_ref[...]                                    # (1, C_in, L_in) in vregs
    acc = jnp.zeros((out_ref.shape[1], l_out), jnp.float32)
    for k in range(kernel):                                 # static unroll over taps
        start = k * dilation
        if stride == 1:
            win = xp[0, :, start:start + l_out]             # (C_in, L_out) static slice
        else:
            # TODO(synk): stride > 1 uses a strided lax.slice; not exercised in the demo.
            lim = start + (l_out - 1) * stride + 1
            win = jax.lax.slice(xp, (0, 0, start), (1, c_in, lim), (1, 1, stride))[0]
        acc = acc + jnp.dot(w_ref[k], win, preferred_element_type=jnp.float32)
    out_ref[0] = (acc + b_ref[...].astype(jnp.float32)).astype(out_ref.dtype)


# ---------------------------------------------------------------------------
# Kernels
# ---------------------------------------------------------------------------
def _cached_pad_conv_kernel(left_ref, x_ref, w_ref, b_ref, out_ref, cache_ref,
                            padded_ref, *, kernel, stride, dilation, pad_total):
    """cache=True: padded = [left_pad | x] (VMEM only), emit conv(padded) + new cache."""
    j = pl.program_id(1)
    t = x_ref.shape[-1]
    p = pad_total

    @pl.when(j == 0)
    def _():
        # Direct offset stores -- no concatenate, padded never touches HBM.
        padded_ref[:, :, 0:p] = left_ref[...]
        padded_ref[:, :, pl.ds(p, t)] = x_ref[...]
        # New cache = last `p` samples of the padded signal (static branch on t vs p).
        if t >= p:
            cache_ref[...] = x_ref[:, :, t - p:]
        else:
            cache_ref[:, :, 0:p - t] = left_ref[:, :, t:]
            cache_ref[:, :, pl.ds(p - t, t)] = x_ref[...]

    _conv_from_padded(padded_ref, w_ref, b_ref, out_ref,
                      kernel=kernel, stride=stride, dilation=dilation)


def _pad_conv_kernel(x_ref, w_ref, b_ref, out_ref, padded_ref,
                     *, kernel, stride, dilation, pad):
    """cache=False: symmetric constant padding (VMEM only) + conv."""
    # TODO(synk): pad_mode other than 'constant' (e.g. 'reflect') not implemented.
    j = pl.program_id(1)
    t = x_ref.shape[-1]

    @pl.when(j == 0)
    def _():
        if pad > 0:
            edge = jnp.zeros((1, x_ref.shape[1], pad), padded_ref.dtype)
            padded_ref[:, :, 0:pad] = edge
            padded_ref[:, :, pl.ds(t + pad, pad)] = edge
        padded_ref[:, :, pl.ds(pad, t)] = x_ref[...]

    _conv_from_padded(padded_ref, w_ref, b_ref, out_ref,
                      kernel=kernel, stride=stride, dilation=dilation)


# ---------------------------------------------------------------------------
# Wrapper
# ---------------------------------------------------------------------------
def cached_conv1d_forward(x, left_pad, weight, bias, *, padding, stride=1,
                          dilation=1, cache=True, pad_mode="constant"):
    """Functional CachedConv1d.forward.

    Args:
      x:        (B, C_in, T)
      left_pad: (1, C_in, 2*padding) streaming buffer (cache=True); ignored otherwise.
      weight:   (C_out, C_in, K) conv weight, bias: (C_out,)
    Returns:
      (y, new_left_pad): y is (B, C_out, L_out); new_left_pad is None when cache=False.
    """
    if isinstance(dilation, (tuple, list)):
        dilation = dilation[0]
    B, C_in, T = x.shape
    C_out, C_in_w, K = weight.shape
    assert C_in_w == C_in
    if (not cache) and pad_mode != "constant":
        raise NotImplementedError("only pad_mode='constant' is supported")

    p_total = 2 * padding                      # CachedConv1d uses CachedPadding(2*padding)
    l_in = T + p_total                         # same padded length in both modes
    l_out = (l_in - dilation * (K - 1) - 1) // stride + 1
    assert l_out > 0, "input too short for this kernel/stride/dilation"

    cout_tile = _pick_cout_tile(C_out)
    n_ct = pl.cdiv(C_out, cout_tile)

    w_t = jnp.transpose(weight, (2, 0, 1))     # (K, C_out, C_in): tap-major MXU slabs
    b2 = bias.reshape(C_out, 1)

    dt = jnp.dtype(x.dtype).itemsize
    flops = 2 * B * C_out * C_in * K * l_out
    bytes_accessed = int(dt * (x.size + w_t.size + b2.size + B * C_out * l_out
                               + (2 * C_in * p_total if cache else 0)))
    cost = pl.CostEstimate(flops=flops, transcendentals=0, bytes_accessed=bytes_accessed)

    block_bytes = dt * (C_in * T + K * cout_tile * C_in + cout_tile
                        + cout_tile * l_out + C_in * l_in
                        + (2 * C_in * p_total if cache else 0))
    vmem_limit = int(min(32 * 2 ** 20, max(16 * 2 ** 20, 4 * block_bytes)))

    if cache:
        assert B == 1, "cache mode requires batch size 1 (torch.cat with the buffer)"
        assert p_total > 0, "cache mode needs padding > 0"
        assert left_pad.shape == (1, C_in, p_total)
        kern = functools.partial(_cached_pad_conv_kernel, kernel=K, stride=stride,
                                 dilation=dilation, pad_total=p_total)
        out, new_cache = pl.pallas_call(
            kern,
            out_shape=(jax.ShapeDtypeStruct((B, C_out, l_out), x.dtype),
                       jax.ShapeDtypeStruct((1, C_in, p_total), x.dtype)),
            grid=(B, n_ct),
            in_specs=[
                pl.BlockSpec((1, C_in, p_total), lambda b, j: (0, 0, 0)),
                pl.BlockSpec((1, C_in, T), lambda b, j: (b, 0, 0)),
                pl.BlockSpec((K, cout_tile, C_in), lambda b, j: (0, j, 0)),
                pl.BlockSpec((cout_tile, 1), lambda b, j: (j, 0)),
            ],
            out_specs=(
                pl.BlockSpec((1, cout_tile, l_out), lambda b, j: (b, j, 0)),
                pl.BlockSpec((1, C_in, p_total), lambda b, j: (0, 0, 0)),
            ),
            scratch_shapes=[pltpu.VMEM((1, C_in, l_in), x.dtype)],
            input_output_aliases={0: 1},   # reuse the left_pad buffer for the new cache
            compiler_params=pltpu.CompilerParams(
                dimension_semantics=("arbitrary", "arbitrary"),
                vmem_limit_bytes=vmem_limit),
            cost_estimate=cost,
        )(left_pad, x, w_t, b2)
        return out, new_cache
    else:
        pad = p_total // 2
        kern = functools.partial(_pad_conv_kernel, kernel=K, stride=stride,
                                 dilation=dilation, pad=pad)
        out = pl.pallas_call(
            kern,
            out_shape=jax.ShapeDtypeStruct((B, C_out, l_out), x.dtype),
            grid=(B, n_ct),
            in_specs=[
                pl.BlockSpec((1, C_in, T), lambda b, j: (b, 0, 0)),
                pl.BlockSpec((K, cout_tile, C_in), lambda b, j: (0, j, 0)),
                pl.BlockSpec((cout_tile, 1), lambda b, j: (j, 0)),
            ],
            out_specs=pl.BlockSpec((1, cout_tile, l_out), lambda b, j: (b, j, 0)),
            scratch_shapes=[pltpu.VMEM((1, C_in, l_in), x.dtype)],
            compiler_params=pltpu.CompilerParams(
                dimension_semantics=("parallel", "arbitrary"),
                vmem_limit_bytes=vmem_limit),
            cost_estimate=cost,
        )(x, w_t, b2)
        return out, None


# ---------------------------------------------------------------------------
# Demo / self-check
# ---------------------------------------------------------------------------
if __name__ == "__main__":
    key = jax.random.PRNGKey(0)
    k1, k2, k3, k4 = jax.random.split(key, 4)

    in_chan, out_chan = 4, 8
    kernel, stride, padding, dilation = 3, 1, 1, 1
    P = 2 * padding
    T = 16

    w = 0.1 * jax.random.normal(k1, (out_chan, in_chan, kernel), jnp.float32)
    b = 0.1 * jax.random.normal(k2, (out_chan,), jnp.float32)

    def ref_cached(xx, lp):
        padded = jnp.concatenate([lp, xx], axis=-1)
        new_lp = padded[..., -P:]
        y = jax.lax.conv_general_dilated(
            padded, w, window_strides=(stride,), padding="VALID",
            rhs_dilation=(dilation,), dimension_numbers=("NCH", "OIH", "NCH"))
        return y + b[None, :, None], new_lp

    # --- cache=True streaming path (two steps exercise the buffer update) ---
    x = jax.random.normal(k3, (1, in_chan, T), jnp.float32)
    left0 = jnp.zeros((1, in_chan, P), jnp.float32)
    ref1, ref_c1 = ref_cached(x, left0)
    ref2, ref_c2 = ref_cached(x, ref_c1)

    out1, c1 = cached_conv1d_forward(x, left0, w, b, padding=padding, stride=stride,
                                     dilation=dilation, cache=True)
    out2, c2 = cached_conv1d_forward(x, c1, w, b, padding=padding, stride=stride,
                                     dilation=dilation, cache=True)
    jax.block_until_ready((out1, c1, out2, c2))

    assert jnp.allclose(c1, ref_c1, atol=1e-5), "cache update (step 1) mismatch"
    assert jnp.allclose(c2, ref_c2, atol=1e-5), "cache update (step 2) mismatch"
    assert jnp.allclose(out1, ref1, atol=1e-4, rtol=1e-4), "conv output (step 1) mismatch"
    assert jnp.allclose(out2, ref2, atol=1e-4, rtol=1e-4), "conv output (step 2) mismatch"

    # --- cache=False path (training-style symmetric padding), batch 2 ---
    xb = jax.random.normal(k4, (2, in_chan, T), jnp.float32)
    out_nc, _ = cached_conv1d_forward(xb, None, w, b, padding=padding, stride=stride,
                                      dilation=dilation, cache=False)
    jax.block_until_ready(out_nc)

    xb_pad = jnp.pad(xb, ((0, 0), (0, 0), (padding, padding)))
    ref_nc = jax.lax.conv_general_dilated(
        xb_pad, w, window_strides=(stride,), padding="VALID",
        rhs_dilation=(dilation,), dimension_numbers=("NCH", "OIH", "NCH"))
    ref_nc = ref_nc + b[None, :, None]
    assert jnp.allclose(out_nc, ref_nc, atol=1e-4, rtol=1e-4), "non-cache output mismatch"

    print("KERNEL_OK")
</pallas_src>

<mosaic_0001>
module attributes {stable_mosaic.version = 11 : i64} {
  func.func @_cached_pad_conv_kernel(%arg0: i32, %arg1: i32, %arg2: memref<1x4x2xf32, #tpu.memory_space<vmem>>, %arg3: memref<1x4x16xf32, #tpu.memory_space<vmem>>, %arg4: memref<3x8x4xf32, #tpu.memory_space<vmem>>, %arg5: memref<8x1xf32, #tpu.memory_space<vmem>>, %arg6: memref<1x8x16xf32, #tpu.memory_space<vmem>>, %arg7: memref<1x4x2xf32, #tpu.memory_space<vmem>>, %arg8: memref<1x4x18xf32, #tpu.memory_space<vmem>>) attributes {dimension_semantics = [#tpu.dimension_semantics<arbitrary>, #tpu.dimension_semantics<arbitrary>], iteration_bounds = array<i64: 1, 1>, scalar_prefetch = 0 : i64, scratch_operands = 1 : i64, tpu.core_type = #tpu.core_type<tc>, window_params = [{pipeline_mode = #tpu.pipeline_mode<synchronous>, transform_indices = @transform_0, window_bounds = array<i64: 1, 4, 2>}, {transform_indices = @transform_1, window_bounds = array<i64: 1, 4, 16>}, {transform_indices = @transform_2, window_bounds = array<i64: 3, 8, 4>}, {transform_indices = @transform_3, window_bounds = array<i64: 8, 1>}, {transform_indices = @transform_4, window_bounds = array<i64: 1, 8, 16>}, {pipeline_mode = #tpu.pipeline_mode<synchronous>, transform_indices = @transform_5, window_bounds = array<i64: 1, 4, 2>}]} {
    %c0_i32 = arith.constant 0 : i32
    %0 = arith.cmpi eq, %arg1, %c0_i32 : i32
    %1 = arith.extui %0 : i1 to i32
    %c0_i32_0 = arith.constant 0 : i32
    %2 = arith.cmpi ne, %1, %c0_i32_0 : i32
    scf.if %2 {
      %c0_18 = arith.constant 0 : index
      %c0_19 = arith.constant 0 : index
      %c0_20 = arith.constant 0 : index
      %29 = vector.load %arg2[%c0_18, %c0_19, %c0_20] : memref<1x4x2xf32, #tpu.memory_space<vmem>>, vector<1x4x2xf32>
      %c0_21 = arith.constant 0 : index
      %c0_22 = arith.constant 0 : index
      %c0_23 = arith.constant 0 : index
      %30 = vector.load %arg8[%c0_21, %c0_22, %c0_23] : memref<1x4x18xf32, #tpu.memory_space<vmem>>, vector<1x4x2xf32>
      tpu.vector_store %arg8[%c0_21, %c0_22, %c0_23], %29 {strides = array<i32>} : memref<1x4x18xf32, #tpu.memory_space<vmem>>, vector<1x4x2xf32>,
      %c0_24 = arith.constant 0 : index
      %c0_25 = arith.constant 0 : index
      %c0_26 = arith.constant 0 : index
      %31 = vector.load %arg3[%c0_24, %c0_25, %c0_26] : memref<1x4x16xf32, #tpu.memory_space<vmem>>, vector<1x4x16xf32>
      %c0_27 = arith.constant 0 : index
      %c0_28 = arith.constant 0 : index
      %c2_29 = arith.constant 2 : index
      %32 = vector.load %arg8[%c0_27, %c0_28, %c2_29] : memref<1x4x18xf32, #tpu.memory_space<vmem>>, vector<1x4x16xf32>
      tpu.vector_store %arg8[%c0_27, %c0_28, %c2_29], %31 {strides = array<i32>} : memref<1x4x18xf32, #tpu.memory_space<vmem>>, vector<1x4x16xf32>,
      %c0_30 = arith.constant 0 : index
      %c0_31 = arith.constant 0 : index
      %c14 = arith.constant 14 : index
      %33 = vector.load %arg3[%c0_30, %c0_31, %c14] : memref<1x4x16xf32, #tpu.memory_space<vmem>>, vector<1x4x2xf32>
      %c0_32 = arith.constant 0 : index
      %c0_33 = arith.constant 0 : index
      %c0_34 = arith.constant 0 : index
      %34 = vector.load %arg7[%c0_32, %c0_33, %c0_34] : memref<1x4x2xf32, #tpu.memory_space<vmem>>, vector<1x4x2xf32>
      tpu.vector_store %arg7[%c0_32, %c0_33, %c0_34], %33 {strides = array<i32>} : memref<1x4x2xf32, #tpu.memory_space<vmem>>, vector<1x4x2xf32>,
    } else {
    }
    %c0 = arith.constant 0 : index
    %c0_1 = arith.constant 0 : index
    %c0_2 = arith.constant 0 : index
    %3 = vector.load %arg8[%c0, %c0_1, %c0_2] : memref<1x4x18xf32, #tpu.memory_space<vmem>>, vector<1x4x18xf32>
    %cst = arith.constant 0.000000e+00 : f32
    %4 = vector.broadcast %cst : f32 to vector<8x16xf32>
    %5 = vector.extract_strided_slice %3 {offsets = [0, 0, 0], sizes = [1, 4, 16], strides = [1, 1, 1]} : vector<1x4x18xf32> to vector<1x4x16xf32>
    %6 = vector.shape_cast %5 : vector<1x4x16xf32> to vector<4x16xf32>
    %c0_3 = arith.constant 0 : index
    %c0_4 = arith.constant 0 : index
    %c0_5 = arith.constant 0 : index
    %7 = vector.load %arg4[%c0_3, %c0_4, %c0_5] : memref<3x8x4xf32, #tpu.memory_space<vmem>>, vector<1x8x4xf32>
    %8 = vector.shape_cast %7 : vector<1x8x4xf32> to vector<8x4xf32>
    %cst_6 = arith.constant dense<0.000000e+00> : vector<8x16xf32>
    %9 = tpu.matmul %8, %6, %cst_6 {dimension_numbers = #tpu.dot_dimension_numbers<[1], [0], [0], [1], [0, 0, 1, 1], [], []>} : vector<8x4xf32>, vector<4x16xf32>, vector<8x16xf32> -> vector<8x16xf32>
    %10 = arith.addf %4, %9 : vector<8x16xf32>
    %11 = vector.extract_strided_slice %3 {offsets = [0, 0, 1], sizes = [1, 4, 16], strides = [1, 1, 1]} : vector<1x4x18xf32> to vector<1x4x16xf32>
    %12 = vector.shape_cast %11 : vector<1x4x16xf32> to vector<4x16xf32>
    %c1 = arith.constant 1 : index
    %c0_7 = arith.constant 0 : index
    %c0_8 = arith.constant 0 : index
    %13 = vector.load %arg4[%c1, %c0_7, %c0_8] : memref<3x8x4xf32, #tpu.memory_space<vmem>>, vector<1x8x4xf32>
    %14 = vector.shape_cast %13 : vector<1x8x4xf32> to vector<8x4xf32>
    %cst_9 = arith.constant dense<0.000000e+00> : vector<8x16xf32>
    %15 = tpu.matmul %14, %12, %cst_9 {dimension_numbers = #tpu.dot_dimension_numbers<[1], [0], [0], [1], [0, 0, 1, 1], [], []>} : vector<8x4xf32>, vector<4x16xf32>, vector<8x16xf32> -> vector<8x16xf32>
    %16 = arith.addf %10, %15 : vector<8x16xf32>
    %17 = vector.extract_strided_slice %3 {offsets = [0, 0, 2], sizes = [1, 4, 16], strides = [1, 1, 1]} : vector<1x4x18xf32> to vector<1x4x16xf32>
    %18 = vector.shape_cast %17 : vector<1x4x16xf32> to vector<4x16xf32>
    %c2 = arith.constant 2 : index
    %c0_10 = arith.constant 0 : index
    %c0_11 = arith.constant 0 : index
    %19 = vector.load %arg4[%c2, %c0_10, %c0_11] : memref<3x8x4xf32, #tpu.memory_space<vmem>>, vector<1x8x4xf32>
    %20 = vector.shape_cast %19 : vector<1x8x4xf32> to vector<8x4xf32>
    %cst_12 = arith.constant dense<0.000000e+00> : vector<8x16xf32>
    %21 = tpu.matmul %20, %18, %cst_12 {dimension_numbers = #tpu.dot_dimension_numbers<[1], [0], [0], [1], [0, 0, 1, 1], [], []>} : vector<8x4xf32>, vector<4x16xf32>, vector<8x16xf32> -> vector<8x16xf32>
    %22 = arith.addf %16, %21 : vector<8x16xf32>
    %c0_13 = arith.constant 0 : index
    %c0_14 = arith.constant 0 : index
    %23 = vector.load %arg5[%c0_13, %c0_14] : memref<8x1xf32, #tpu.memory_space<vmem>>, vector<8x1xf32>
    %24 = vector.broadcast %23 : vector<8x1xf32> to vector<8x16xf32>
    %25 = arith.addf %22, %24 : vector<8x16xf32>
    %c0_15 = arith.constant 0 : index
    %c0_16 = arith.constant 0 : index
    %c0_17 = arith.constant 0 : index
    %26 = vector.load %arg6[%c0_15, %c0_16, %c0_17] : memref<1x8x16xf32, #tpu.memory_space<vmem>>, vector<1x8x16xf32>
    %27 = vector.shape_cast %26 : vector<1x8x16xf32> to vector<8x16xf32>
    %28 = vector.shape_cast %25 : vector<8x16xf32> to vector<1x8x16xf32>
    tpu.vector_store %arg6[%c0_15, %c0_16, %c0_17], %28 {strides = array<i32>} : memref<1x8x16xf32, #tpu.memory_space<vmem>>, vector<1x8x16xf32>,
    return
  }
  func.func @transform_0(%arg0: i32, %arg1: i32) -> (i32, i32, i32) {
    %c0_i32 = arith.constant 0 : i32
    %c0_i32_0 = arith.constant 0 : i32
    %c0_i32_1 = arith.constant 0 : i32
    %c0_i32_2 = arith.constant 0 : i32
    return %c0_i32, %c0_i32_0, %c0_i32_1 : i32, i32, i32
  }
  func.func @transform_1(%arg0: i32, %arg1: i32) -> (i32, i32, i32) {
    %c0_i32 = arith.constant 0 : i32
    %c0_i32_0 = arith.constant 0 : i32
    %c0_i32_1 = arith.constant 0 : i32
    return %arg0, %c0_i32, %c0_i32_0 : i32, i32, i32
  }
  func.func @transform_2(%arg0: i32, %arg1: i32) -> (i32, i32, i32) {
    %c0_i32 = arith.constant 0 : i32
    %c0_i32_0 = arith.constant 0 : i32
    %c0_i32_1 = arith.constant 0 : i32
    return %c0_i32, %arg1, %c0_i32_0 : i32, i32, i32
  }
  func.func @transform_3(%arg0: i32, %arg1: i32) -> (i32, i32) {
    %c0_i32 = arith.constant 0 : i32
    %c0_i32_0 = arith.constant 0 : i32
    return %arg1, %c0_i32 : i32, i32
  }
  func.func @transform_4(%arg0: i32, %arg1: i32) -> (i32, i32, i32) {
    %c0_i32 = arith.constant 0 : i32
    %c0_i32_0 = arith.constant 0 : i32
    return %arg0, %arg1, %c0_i32 : i32, i32, i32
  }
  func.func @transform_5(%arg0: i32, %arg1: i32) -> (i32, i32, i32) {
    %c0_i32 = arith.constant 0 : i32
    %c0_i32_0 = arith.constant 0 : i32
    %c0_i32_1 = arith.constant 0 : i32
    %c0_i32_2 = arith.constant 0 : i32
    return %c0_i32, %c0_i32_0, %c0_i32_1 : i32, i32, i32
  }
}

</mosaic_0001>

<llo_original>
// kernel: tpu_custom_call.1
$region0: #{tpu_custom_call.1}
  #allocation0 [shape = 'u32[]', space=smem, size = 0x4, offset = 0x4, fixed_abs, tag = 'smem constant byte address 0x4 - core index']
  #allocation1 [shape = 'u32[144,128]{1,0:T(1,128)}', space=vmem, size = 0x12000, scoped, tag = 'internal scratch']
  #allocation2 [shape = 'f32[1,4,18]{2,1,0:T(4,128)}', space=vmem, size = 0x800, scoped, tag = 'scratch operand']
  %s0 = inlined_call_operand.vmem [shape: f32[1,4,2], index: 0, kind: input, shape index: {}, may-alias: {0,5}]
  %s1 = inlined_call_operand.vmem [shape: f32[1,4,16], index: 1, kind: input, shape index: {}]
  %s2 = inlined_call_operand.vmem [shape: f32[3,8,4], index: 2, kind: input, shape index: {}]
  %s3 = inlined_call_operand.vmem [shape: f32[8,1], index: 3, kind: input, shape index: {}]
  %s4 = inlined_call_operand.hbm [shape: f32[1,8,16], index: 4, kind: output, shape index: {0}]
  %s5 = inlined_call_operand.vmem [shape: f32[1,4,2], index: 5, kind: output, shape index: {1}, may-alias: {0,5}]
  %6 = xla_tuple %s4, %s5
  %s7 = sld [smem:[#allocation0]]
  $region38: #{tpu_custom_call.1} parent=0
    _
  %s9 = ssub.s32 1, %s7
  %s10 = scalar_select 0, %s9, %s7
  $region1: #{tpu_custom_call.1} parent=0
    #allocation3 [shape = 'u8[4096]{0}', space=vmem, size = 0x1000, scoped, tag = 'output window, operand 0, single buffered']
    #allocation4 [shape = 's32[1]{0}', space=sflag, size = 0x4, scoped, tag = 'scoped memory for tpu_custom_call.1']
    %11 = vsyncpa [#allocation4], 0
    // Predicated region
    $region2: #{tpu_custom_call.1} parent=1 // pred_check
      _
    $region3: #{tpu_custom_call.1} parent=1 // pred_check_branch
      %13 = sbr.rel (0) target = $region5
    $region4: #{tpu_custom_call.1} parent=1 // pred_region
      _
    $region5: #{tpu_custom_call.1} parent=1 // pred_fallthru
      _
    // Predicated region
    $region6: #{tpu_custom_call.1} parent=1 // pred_check
      _
    $region7: #{tpu_custom_call.1} parent=1 // pred_check_branch
      %15 = sbr.rel (0) target = $region9
    $region8: #{tpu_custom_call.1} parent=1 // pred_region
      _
    $region9: #{tpu_custom_call.1} parent=1 // pred_fallthru
      _
    // Predicated region
    $region10: #{tpu_custom_call.1} parent=1 // pred_check
      _
    $region11: #{tpu_custom_call.1} parent=1 // pred_check_branch
      %17 = sbr.rel (0) target = $region13
    $region12: #{tpu_custom_call.1} parent=1 // pred_region
      _
    $region13: #{tpu_custom_call.1} parent=1 // pred_fallthru
      _
    // Predicated region
    $region14: #{tpu_custom_call.1} parent=1 // pred_check
      _
    $region15: #{tpu_custom_call.1} parent=1 // pred_check_branch
      %19 = sbr.rel (0) target = $region17
    $region16: #{tpu_custom_call.1} parent=1 // pred_region
      _
    $region17: #{tpu_custom_call.1} parent=1 // pred_fallthru
      _
    %p20 = scmp.eq.s32.totalorder 0, 0
    // Predicated region
    $region18: #{tpu_custom_call.1} parent=1 // pred_check
      %p21 = pneg %p20
    $region19: #{tpu_custom_call.1} parent=1 // pred_check_branch
      %23 = sbr.rel (%p21) target = $region21
    $region20: #{tpu_custom_call.1} parent=1 // pred_region
      %v24 = vld [vmem:[%s0] sm:$0xf]
      %vm25 = vcmask 11264
      %26 = vst.msk [vmem:[#allocation2] sm:$0xf] %vm25, %v24
      %v27 = vld [vmem:[%s1] sm:$0xf]
      %29 = vrot.lane.b32.xlu0 %v27, 2
      %v30 = vpop.permute.xlu0 %29
      %vm32 = vcmask 142352
      %33 = vst.msk [vmem:[#allocation2] sm:$0xf] %vm32, %v30
      %v34 = vld [vmem:[%s1] sm:$0xf]
      %36 = vrot.lane.b32.xlu0 %v34, 114
      %v37 = vpop.permute.xlu0 %36
      %39 = vst.msk [vmem:[%s5] sm:$0xf] %vm25, %v37
    $region21: #{tpu_custom_call.1} parent=1 // pred_fallthru
      _
    %v40 = vld [vmem:[#allocation2] sm:$0xf]
    %v41 = vld [vmem:[%s2] sm:$0xff]
    %s42 = scalar_lea.vmem %s2, 8
    %v43 = vld [vmem:[%s42] sm:$0xff]
    %45 = vrot.lane.b32.xlu0 %v40, 127
    %v46 = vpop.permute.xlu0 %45
    %vm47 = vcmask 31744
    %v49 = vsel %vm47, %v43, 0
    %vm51 = vcmask 1043456
    %v52 = vsel %vm51, %v46, 0
    %54 = vmatprep.subr.mxu0 0.0
    %55 = vmatpush1.msra.mxu0 0.0
    %56 = vmatprep.subr.mxu0 0.0
    %57 = vmatpush1.msra.mxu0 0.0
    %58 = vmatprep.subr.mxu0 0.0
    %59 = vmatpush1.msra.mxu0 0.0
    %60 = vmatprep.subr.mxu0 0.0
    %61 = vmatpush1.msra.mxu0 0.0
    %62 = vmatprep.subr.mxu0 0.0
    %63 = vmatpush1.msra.mxu0 0.0
    %64 = vmatprep.subr.mxu0 0.0
    %65 = vmatpush1.msra.mxu0 0.0
    %66 = vmatprep.subr.mxu0 0.0
    %67 = vmatpush1.msra.mxu0 0.0
    %68 = vmatprep.subr.mxu0 0.0
    %69 = vmatpush1.msra.mxu0 0.0
    %70 = vmatprep.subr.mxu0 0.0
    %71 = vmatpush1.msra.mxu0 0.0
    %72 = vmatprep.subr.mxu0 0.0
    %73 = vmatpush1.msra.mxu0 0.0
    %74 = vmatprep.subr.mxu0 0.0
    %75 = vmatpush1.msra.mxu0 0.0
    %76 = vmatprep.subr.mxu0 0.0
    %77 = vmatpush1.msra.mxu0 0.0
    %78 = vmatprep.subr.mxu0 0.0
    %79 = vmatpush1.msra.mxu0 0.0
    %80 = vmatprep.subr.mxu0 0.0
    %81 = vmatpush1.msra.mxu0 0.0
    %82 = vmatprep.subr.mxu0 0.0
    %83 = vmatpush1.msra.mxu0 0.0
    %84 = vmatprep.subr.mxu0 0.0
    %85 = vmatpush1.msra.mxu0 %v52
    %86 = vmatprep.subr.mxu0 0.0
    %87 = vmatpush2.msra.mxu0 0.0
    %88 = vmatprep.subr.mxu0 0.0
    %89 = vmatpush2.msra.mxu0 0.0
    %90 = vmatprep.subr.mxu0 0.0
    %91 = vmatpush2.msra.mxu0 0.0
    %92 = vmatprep.subr.mxu0 0.0
    %93 = vmatpush2.msra.mxu0 0.0
    %94 = vmatprep.subr.mxu0 0.0
    %95 = vmatpush2.msra.mxu0 0.0
    %96 = vmatprep.subr.mxu0 0.0
    %97 = vmatpush2.msra.mxu0 0.0
    %98 = vmatprep.subr.mxu0 0.0
    %99 = vmatpush2.msra.mxu0 0.0
    %100 = vmatprep.subr.mxu0 0.0
    %101 = vmatpush2.msra.mxu0 0.0
    %102 = vmatprep.subr.mxu0 0.0
    %103 = vmatpush2.msra.mxu0 0.0
    %104 = vmatprep.subr.mxu0 0.0
    %105 = vmatpush2.msra.mxu0 0.0
    %106 = vmatprep.subr.mxu0 0.0
    %107 = vmatpush2.msra.mxu0 0.0
    %108 = vmatprep.subr.mxu0 0.0
    %109 = vmatpush2.msra.mxu0 0.0
    %110 = vmatprep.subr.mxu0 0.0
    %111 = vmatpush2.msra.mxu0 0.0
    %112 = vmatprep.subr.mxu0 0.0
    %113 = vmatpush2.msra.mxu0 0.0
    %114 = vmatprep.subr.mxu0 0.0
    %115 = vmatpush2.msra.mxu0 0.0
    %116 = vmatprep.subr.mxu0 0.0
    %117 = vmatpush2.msra.mxu0 0.0
    %118 = vmatprep.mubr.f32.mxu0 0.0
    %119 = vmatmul.mubr.f32.gmra.mxu0 %v49
    %v120 = vpop.f32.mrf.mxu0
    %v121 = vadd.f32 0.0, %v120
    %v122 = vpop.f32.mrf.mxu0
    %123 = vdwg.mxu0
    %v125 = vsel %vm47, %v41, 0
    %v127 = vsel %vm51, %v40, 0
    %129 = vmatprep.subr.mxu0 0.0
    %130 = vmatpush1.msra.mxu0 0.0
    %131 = vmatprep.subr.mxu0 0.0
    %132 = vmatpush1.msra.mxu0 0.0
    %133 = vmatprep.subr.mxu0 0.0
    %134 = vmatpush1.msra.mxu0 0.0
    %135 = vmatprep.subr.mxu0 0.0
    %136 = vmatpush1.msra.mxu0 0.0
    %137 = vmatprep.subr.mxu0 0.0
    %138 = vmatpush1.msra.mxu0 0.0
    %139 = vmatprep.subr.mxu0 0.0
    %140 = vmatpush1.msra.mxu0 0.0
    %141 = vmatprep.subr.mxu0 0.0
    %142 = vmatpush1.msra.mxu0 0.0
    %143 = vmatprep.subr.mxu0 0.0
    %144 = vmatpush1.msra.mxu0 0.0
    %145 = vmatprep.subr.mxu0 0.0
    %146 = vmatpush1.msra.mxu0 0.0
    %147 = vmatprep.subr.mxu0 0.0
    %148 = vmatpush1.msra.mxu0 0.0
    %149 = vmatprep.subr.mxu0 0.0
    %150 = vmatpush1.msra.mxu0 0.0
    %151 = vmatprep.subr.mxu0 0.0
    %152 = vmatpush1.msra.mxu0 0.0
    %153 = vmatprep.subr.mxu0 0.0
    %154 = vmatpush1.msra.mxu0 0.0
    %155 = vmatprep.subr.mxu0 0.0
    %156 = vmatpush1.msra.mxu0 0.0
    %157 = vmatprep.subr.mxu0 0.0
    %158 = vmatpush1.msra.mxu0 0.0
    %159 = vmatprep.subr.mxu0 0.0
    %160 = vmatpush1.msra.mxu0 %v127
    %161 = vmatprep.subr.mxu0 0.0
    %162 = vmatpush2.msra.mxu0 0.0
    %163 = vmatprep.subr.mxu0 0.0
    %164 = vmatpush2.msra.mxu0 0.0
    %165 = vmatprep.subr.mxu0 0.0
    %166 = vmatpush2.msra.mxu0 0.0
    %167 = vmatprep.subr.mxu0 0.0
    %168 = vmatpush2.msra.mxu0 0.0
    %169 = vmatprep.subr.mxu0 0.0
    %170 = vmatpush2.msra.mxu0 0.0
    %171 = vmatprep.subr.mxu0 0.0
    %172 = vmatpush2.msra.mxu0 0.0
    %173 = vmatprep.subr.mxu0 0.0
    %174 = vmatpush2.msra.mxu0 0.0
    %175 = vmatprep.subr.mxu0 0.0
    %176 = vmatpush2.msra.mxu0 0.0
    %177 = vmatprep.subr.mxu0 0.0
    %178 = vmatpush2.msra.mxu0 0.0
    %179 = vmatprep.subr.mxu0 0.0
    %180 = vmatpush2.msra.mxu0 0.0
    %181 = vmatprep.subr.mxu0 0.0
    %182 = vmatpush2.msra.mxu0 0.0
    %183 = vmatprep.subr.mxu0 0.0
    %184 = vmatpush2.msra.mxu0 0.0
    %185 = vmatprep.subr.mxu0 0.0
    %186 = vmatpush2.msra.mxu0 0.0
    %187 = vmatprep.subr.mxu0 0.0
    %188 = vmatpush2.msra.mxu0 0.0
    %189 = vmatprep.subr.mxu0 0.0
    %190 = vmatpush2.msra.mxu0 0.0
    %191 = vmatprep.subr.mxu0 0.0
    %192 = vmatpush2.msra.mxu0 0.0
    %193 = vmatprep.mubr.f32.mxu0 0.0
    %194 = vmatmul.mubr.f32.gmra.mxu0 %v125
    %v195 = vpop.f32.mrf.mxu0
    %v196 = vadd.f32 %v121, %v195
    %v197 = vpop.f32.mrf.mxu0
    %198 = vdwg.mxu0
    %s199 = scalar_lea.vmem %s2, 16
    %v200 = vld [vmem:[%s199] sm:$0xff]
    %201 = vrot.lane.b32.xlu0 %v40, 126
    %v202 = vpop.permute.xlu0 %201
    %v204 = vsel %vm47, %v200, 0
    %v206 = vsel %vm51, %v202, 0
    %208 = vmatprep.subr.mxu0 0.0
    %209 = vmatpush1.msra.mxu0 0.0
    %210 = vmatprep.subr.mxu0 0.0
    %211 = vmatpush1.msra.mxu0 0.0
    %212 = vmatprep.subr.mxu0 0.0
    %213 = vmatpush1.msra.mxu0 0.0
    %214 = vmatprep.subr.mxu0 0.0
    %215 = vmatpush1.msra.mxu0 0.0
    %216 = vmatprep.subr.mxu0 0.0
    %217 = vmatpush1.msra.mxu0 0.0
    %218 = vmatprep.subr.mxu0 0.0
    %219 = vmatpush1.msra.mxu0 0.0
    %220 = vmatprep.subr.mxu0 0.0
    %221 = vmatpush1.msra.mxu0 0.0
    %222 = vmatprep.subr.mxu0 0.0
    %223 = vmatpush1.msra.mxu0 0.0
    %224 = vmatprep.subr.mxu0 0.0
    %225 = vmatpush1.msra.mxu0 0.0
    %226 = vmatprep.subr.mxu0 0.0
    %227 = vmatpush1.msra.mxu0 0.0
    %228 = vmatprep.subr.mxu0 0.0
    %229 = vmatpush1.msra.mxu0 0.0
    %230 = vmatprep.subr.mxu0 0.0
    %231 = vmatpush1.msra.mxu0 0.0
    %232 = vmatprep.subr.mxu0 0.0
    %233 = vmatpush1.msra.mxu0 0.0
    %234 = vmatprep.subr.mxu0 0.0
    %235 = vmatpush1.msra.mxu0 0.0
    %236 = vmatprep.subr.mxu0 0.0
    %237 = vmatpush1.msra.mxu0 0.0
    %238 = vmatprep.subr.mxu0 0.0
    %239 = vmatpush1.msra.mxu0 %v206
    %240 = vmatprep.subr.mxu0 0.0
    %241 = vmatpush2.msra.mxu0 0.0
    %242 = vmatprep.subr.mxu0 0.0
    %243 = vmatpush2.msra.mxu0 0.0
    %244 = vmatprep.subr.mxu0 0.0
    %245 = vmatpush2.msra.mxu0 0.0
    %246 = vmatprep.subr.mxu0 0.0
    %247 = vmatpush2.msra.mxu0 0.0
    %248 = vmatprep.subr.mxu0 0.0
    %249 = vmatpush2.msra.mxu0 0.0
    %250 = vmatprep.subr.mxu0 0.0
    %251 = vmatpush2.msra.mxu0 0.0
    %252 = vmatprep.subr.mxu0 0.0
    %253 = vmatpush2.msra.mxu0 0.0
    %254 = vmatprep.subr.mxu0 0.0
    %255 = vmatpush2.msra.mxu0 0.0
    %256 = vmatprep.subr.mxu0 0.0
    %257 = vmatpush2.msra.mxu0 0.0
    %258 = vmatprep.subr.mxu0 0.0
    %259 = vmatpush2.msra.mxu0 0.0
    %260 = vmatprep.subr.mxu0 0.0
    %261 = vmatpush2.msra.mxu0 0.0
    %262 = vmatprep.subr.mxu0 0.0
    %263 = vmatpush2.msra.mxu0 0.0
    %264 = vmatprep.subr.mxu0 0.0
    %265 = vmatpush2.msra.mxu0 0.0
    %266 = vmatprep.subr.mxu0 0.0
    %267 = vmatpush2.msra.mxu0 0.0
    %268 = vmatprep.subr.mxu0 0.0
    %269 = vmatpush2.msra.mxu0 0.0
    %270 = vmatprep.subr.mxu0 0.0
    %271 = vmatpush2.msra.mxu0 0.0
    %272 = vmatprep.mubr.f32.mxu0 0.0
    %273 = vmatmul.mubr.f32.gmra.mxu0 %v204
    %v274 = vpop.f32.mrf.mxu0
    %v275 = vadd.f32 0.0, %v274
    %v276 = vpop.f32.mrf.mxu0
    %277 = vdwg.mxu0
    %v278 = vadd.f32 %v196, %v275
    %v279 = vld [vmem:[%s3] sm:$0xff]
    %281 = vset.pattern.permute.xlu0 0
    %282 = vperm.xlu0 %281, %v279
    %v283 = vpop.permute.xlu0 %282
    %v285 = vadd.f32 %v278, %v283
    %vm286 = vcmask 130048
    %287 = vst.msk [vmem:[#allocation3] sm:$0xff] %vm286, %v285
    // Predicated region
    $region22: #{tpu_custom_call.1} parent=1 // pred_check
      _
    $region23: #{tpu_custom_call.1} parent=1 // pred_check_branch
      %289 = sbr.rel (0) target = $region25
    $region24: #{tpu_custom_call.1} parent=1 // pred_region
      %s291 = ssub.s32 128, 128
      %292 = vsyncadd [#allocation4], %s291
      %s294 = sshll.u32 [#allocation3], 4
      %s295 = int_to_ptr.vmem [resolvable:$true] %s294
      %297 = dma.vmem_to_hbm [thread:$0]  %s295, 128, %s4, [#allocation4]
    $region25: #{tpu_custom_call.1} parent=1 // pred_fallthru
      _
    // Predicated region
    $region26: #{tpu_custom_call.1} parent=1 // pred_check
      _
    $region27: #{tpu_custom_call.1} parent=1 // pred_check_branch
      %299 = sbr.rel (0) target = $region29
    $region28: #{tpu_custom_call.1} parent=1 // pred_region
      _
    $region29: #{tpu_custom_call.1} parent=1 // pred_fallthru
      _
    // Predicated region
    $region30: #{tpu_custom_call.1} parent=1 // pred_check
      _
    $region31: #{tpu_custom_call.1} parent=1 // pred_check_branch
      %301 = sbr.rel (0) target = $region33
    $region32: #{tpu_custom_call.1} parent=1 // pred_region
      %302 = dma.done [#allocation4], 128
    $region33: #{tpu_custom_call.1} parent=1 // pred_fallthru
      _
    // Predicated region
    $region34: #{tpu_custom_call.1} parent=1 // pred_check
      _
    $region35: #{tpu_custom_call.1} parent=1 // pred_check_branch
      %304 = sbr.rel (0) target = $region37
    $region36: #{tpu_custom_call.1} parent=1 // pred_region
      _
    $region37: #{tpu_custom_call.1} parent=1 // pred_fallthru
      _
    %305 = vsyncpa [#allocation4], 1

</llo_original>
